<compile_context>
chip_gen: v7x
topology: tpu7x:2x2x1
jax: 0.10.0
libtpu: 0.0.40
codegen_flags: <defaults>
</compile_context>

<pallas_src>
import jax
import jax.numpy as jnp
from jax.experimental import pallas as pl
from jax.experimental.pallas import tpu as pltpu

_LANES = 128
_MIB = 1 << 20


def _fma_kernel(t_ref, u_ref, x_ref, o_ref):
    # out = t * u + (x - u)   -- same association as the PyTorch module,
    # which precomputes c = x - u in __init__.
    o_ref[...] = t_ref[...] * u_ref[...] + (x_ref[...] - u_ref[...])


def _sublane_multiple(dtype):
    """Native packed sublane tile: 8 for 4-byte, 16 for 2-byte, 32 for 1-byte."""
    itemsize = jnp.dtype(dtype).itemsize
    if itemsize >= 4:
        return 8
    if itemsize == 2:
        return 16
    return 32


def _block_budget_bytes():
    """(per-operand block bytes, scoped VMEM limit) — generation aware."""
    vmem = None
    try:
        info = pltpu.get_tpu_info()
        vmem = getattr(info, "vmem_capacity_bytes", None)
    except Exception:
        vmem = None
    if vmem is not None and vmem >= 100 * _MIB:
        # v5e / v6e: 128 MiB physical VMEM -> 4 MiB blocks, raised scoped limit.
        return 4 * _MIB, 64 * _MIB
    # v7x (64 MiB physical VMEM) or unknown: 2 MiB blocks, 32 MiB scoped limit.
    return 2 * _MIB, 32 * _MIB


def _pick_row_tile(R, cap_rows, sub, split_rows):
    """Row tile: multiple of `sub`, <= cap_rows; >= 2 blocks for mid sizes."""
    cdiv = lambda a, b: -(-a // b)
    if R > cap_rows:
        return max(sub, (cap_rows // sub) * sub)
    if R >= split_rows:
        # Mid-sized: split into >= 2 parallel blocks so both v7x TCs stream.
        return min(R, cdiv(cdiv(R, 2), sub) * sub)
    return R  # small: one full-extent block (always a legal BlockSpec)


def function_x_forward(x, u, t):
    """Computes t * u + (x - u) in a single fused Pallas elementwise kernel."""
    assert x.shape == u.shape == t.shape
    assert x.dtype == u.dtype == t.dtype
    orig_shape = t.shape
    dtype = t.dtype
    itemsize = jnp.dtype(dtype).itemsize
    n = t.size

    tf, uf, xf = t.reshape(-1), u.reshape(-1), x.reshape(-1)
    n_bulk = (n // _LANES) * _LANES

    if n_bulk == 0:
        # Sub-vreg input: a kernel launch costs more than the math.
        return (tf * uf + (xf - uf)).reshape(orig_shape)

    block_bytes, vmem_limit = _block_budget_bytes()
    sub = _sublane_multiple(dtype)
    R = n_bulk // _LANES
    cap_rows = max(sub, ((block_bytes // (_LANES * itemsize)) // sub) * sub)
    split_rows = max(2 * sub, (512 * 1024) // (_LANES * itemsize))
    tr = _pick_row_tile(R, cap_rows, sub, split_rows)
    grid = (pl.cdiv(R, tr),)

    if n_bulk == n:
        t2 = tf.reshape(R, _LANES)
        u2 = uf.reshape(R, _LANES)
        x2 = xf.reshape(R, _LANES)
    else:
        t2 = tf[:n_bulk].reshape(R, _LANES)
        u2 = uf[:n_bulk].reshape(R, _LANES)
        x2 = xf[:n_bulk].reshape(R, _LANES)

    spec = pl.BlockSpec((tr, _LANES), lambda i: (i, 0))

    out2 = pl.pallas_call(
        _fma_kernel,
        out_shape=jax.ShapeDtypeStruct((R, _LANES), dtype),
        grid_spec=pl.GridSpec(
            grid=grid,
            in_specs=[spec, spec, spec],
            out_specs=spec,
        ),
        compiler_params=pltpu.CompilerParams(
            dimension_semantics=("parallel",),
            vmem_limit_bytes=vmem_limit,
        ),
        cost_estimate=pl.CostEstimate(
            flops=3 * n_bulk,
            transcendentals=0,
            bytes_accessed=4 * n_bulk * itemsize,
        ),
    )(t2, u2, x2)

    out_bulk = out2.reshape(-1)
    if n_bulk == n:
        return out_bulk.reshape(orig_shape)
    # Ragged tail (< 128 elements): plain JAX; avoids padding + slicing the
    # whole tensor through HBM just for the tail.
    tail = tf[n_bulk:] * uf[n_bulk:] + (xf[n_bulk:] - uf[n_bulk:])
    return jnp.concatenate([out_bulk, tail]).reshape(orig_shape)


if __name__ == "__main__":
    key = jax.random.PRNGKey(0)
    kx, ku, kt = jax.random.split(key, 3)

    shape = (2, 4, 16, 16)  # NCHW, small
    # Deterministic "parameters" of the module (x and u from __init__).
    x = jax.random.normal(kx, shape, dtype=jnp.float32)
    u = jax.random.normal(ku, shape, dtype=jnp.float32)
    # Forward input.
    t = jax.random.normal(kt, shape, dtype=jnp.float32)

    out = function_x_forward(x, u, t)
    out = jax.block_until_ready(out)

    # Reference check against plain JAX (mirrors the PyTorch forward).
    ref = t * u + (x - u)
    assert out.shape == shape
    assert jnp.allclose(out, ref, atol=1e-6, rtol=1e-6), "mismatch vs reference"

    print("KERNEL_OK")
</pallas_src>

<mosaic_0001>
module attributes {stable_mosaic.version = 11 : i64} {
  func.func @_fma_kernel(%arg0: i32, %arg1: memref<16x128xf32, #tpu.memory_space<vmem>>, %arg2: memref<16x128xf32, #tpu.memory_space<vmem>>, %arg3: memref<16x128xf32, #tpu.memory_space<vmem>>, %arg4: memref<16x128xf32, #tpu.memory_space<vmem>>) attributes {dimension_semantics = [#tpu.dimension_semantics<parallel>], iteration_bounds = array<i64: 1>, scalar_prefetch = 0 : i64, scratch_operands = 0 : i64, tpu.core_type = #tpu.core_type<tc>, window_params = [{transform_indices = @transform_0, window_bounds = array<i64: 16, 128>}, {transform_indices = @transform_1, window_bounds = array<i64: 16, 128>}, {transform_indices = @transform_2, window_bounds = array<i64: 16, 128>}, {transform_indices = @transform_3, window_bounds = array<i64: 16, 128>}]} {
    %c0 = arith.constant 0 : index
    %c0_0 = arith.constant 0 : index
    %0 = vector.load %arg1[%c0, %c0_0] : memref<16x128xf32, #tpu.memory_space<vmem>>, vector<16x128xf32>
    %c0_1 = arith.constant 0 : index
    %c0_2 = arith.constant 0 : index
    %1 = vector.load %arg2[%c0_1, %c0_2] : memref<16x128xf32, #tpu.memory_space<vmem>>, vector<16x128xf32>
    %2 = arith.mulf %0, %1 : vector<16x128xf32>
    %c0_3 = arith.constant 0 : index
    %c0_4 = arith.constant 0 : index
    %3 = vector.load %arg3[%c0_3, %c0_4] : memref<16x128xf32, #tpu.memory_space<vmem>>, vector<16x128xf32>
    %c0_5 = arith.constant 0 : index
    %c0_6 = arith.constant 0 : index
    %4 = vector.load %arg2[%c0_5, %c0_6] : memref<16x128xf32, #tpu.memory_space<vmem>>, vector<16x128xf32>
    %5 = arith.subf %3, %4 : vector<16x128xf32>
    %6 = arith.addf %2, %5 : vector<16x128xf32>
    %c0_7 = arith.constant 0 : index
    %c0_8 = arith.constant 0 : index
    %7 = vector.load %arg4[%c0_7, %c0_8] : memref<16x128xf32, #tpu.memory_space<vmem>>, vector<16x128xf32>
    tpu.vector_store %arg4[%c0_7, %c0_8], %6 {strides = array<i32>} : memref<16x128xf32, #tpu.memory_space<vmem>>, vector<16x128xf32>,
    return
  }
  func.func @transform_0(%arg0: i32) -> (i32, i32) {
    %c0_i32 = arith.constant 0 : i32
    %c0_i32_0 = arith.constant 0 : i32
    return %arg0, %c0_i32 : i32, i32
  }
  func.func @transform_1(%arg0: i32) -> (i32, i32) {
    %c0_i32 = arith.constant 0 : i32
    %c0_i32_0 = arith.constant 0 : i32
    return %arg0, %c0_i32 : i32, i32
  }
  func.func @transform_2(%arg0: i32) -> (i32, i32) {
    %c0_i32 = arith.constant 0 : i32
    %c0_i32_0 = arith.constant 0 : i32
    return %arg0, %c0_i32 : i32, i32
  }
  func.func @transform_3(%arg0: i32) -> (i32, i32) {
    %c0_i32 = arith.constant 0 : i32
    %c0_i32_0 = arith.constant 0 : i32
    return %arg0, %c0_i32 : i32, i32
  }
}

</mosaic_0001>

<llo_original>
// kernel: tpu_custom_call.1
$region0: #{tpu_custom_call.1}
  #allocation0 [shape = 'u32[]', space=smem, size = 0x4, offset = 0x4, fixed_abs, tag = 'smem constant byte address 0x4 - core index']
  #allocation1 [shape = 'u32[144,128]{1,0:T(1,128)}', space=vmem, size = 0x12000, scoped, tag = 'internal scratch']
  %s0 = inlined_call_operand.hbm [shape: f32[16,128], index: 0, kind: input, shape index: {}]
  %s1 = inlined_call_operand.hbm [shape: f32[16,128], index: 1, kind: input, shape index: {}]
  %s2 = inlined_call_operand.hbm [shape: f32[16,128], index: 2, kind: input, shape index: {}]
  %s3 = inlined_call_operand.hbm [shape: f32[16,128], index: 3, kind: output, shape index: {}]
  %s4 = sld [smem:[#allocation0]]
  $region34: #{tpu_custom_call.1} parent=0
    _
  %s6 = ssub.s32 1, %s4
  %s7 = scalar_select 0, %s6, %s4
  $region1: #{tpu_custom_call.1} parent=0
    #allocation2 [shape = 'u8[8192]{0}', space=vmem, size = 0x2000, scoped, tag = 'input window, operand 0, single buffered']
    #allocation3 [shape = 's32[1]{0}', space=sflag, size = 0x4, scoped, tag = 'scoped memory for tpu_custom_call.1']
    #allocation4 [shape = 's32[1]{0}', space=sflag, size = 0x4, scoped, tag = 'scoped memory for tpu_custom_call.1']
    #allocation5 [shape = 'u8[8192]{0}', space=vmem, size = 0x2000, scoped, tag = 'input window, operand 1, single buffered']
    #allocation6 [shape = 's32[1]{0}', space=sflag, size = 0x4, scoped, tag = 'scoped memory for tpu_custom_call.1']
    #allocation7 [shape = 'u8[8192]{0}', space=vmem, size = 0x2000, scoped, tag = 'input window, operand 2, single buffered']
    #allocation8 [shape = 'u8[8192]{0}', space=vmem, size = 0x2000, scoped, tag = 'output window, operand 0, single buffered']
    %8 = vsyncpa [#allocation3], 0
    %9 = vsyncpa [#allocation6], 0
    %10 = vsyncpa [#allocation4], 0
    // Predicated region
    $region2: #{tpu_custom_call.1} parent=1 // pred_check
      _
    $region3: #{tpu_custom_call.1} parent=1 // pred_check_branch
      %12 = sbr.rel (0) target = $region5
    $region4: #{tpu_custom_call.1} parent=1 // pred_region
      %s14 = ssub.s32 256, 256
      %15 = vsyncadd [#allocation3], %s14
      %s16 = sshll.u32 [#allocation2], 4
      %s17 = int_to_ptr.vmem [resolvable:$true] %s16
      %22 = dma.hbm_to_vmem [thread:$0]  %s0, 256, %s17, [#allocation3], 128, 128, 8
    $region5: #{tpu_custom_call.1} parent=1 // pred_fallthru
      _
    // Predicated region
    $region6: #{tpu_custom_call.1} parent=1 // pred_check
      _
    $region7: #{tpu_custom_call.1} parent=1 // pred_check_branch
      %24 = sbr.rel (0) target = $region9
    $region8: #{tpu_custom_call.1} parent=1 // pred_region
      %s26 = ssub.s32 256, 256
      %27 = vsyncadd [#allocation6], %s26
      %s28 = sshll.u32 [#allocation5], 4
      %s29 = int_to_ptr.vmem [resolvable:$true] %s28
      %34 = dma.hbm_to_vmem [thread:$0]  %s1, 256, %s29, [#allocation6], 128, 128, 8
    $region9: #{tpu_custom_call.1} parent=1 // pred_fallthru
      _
    // Predicated region
    $region10: #{tpu_custom_call.1} parent=1 // pred_check
      _
    $region11: #{tpu_custom_call.1} parent=1 // pred_check_branch
      %36 = sbr.rel (0) target = $region13
    $region12: #{tpu_custom_call.1} parent=1 // pred_region
      %s38 = ssub.s32 256, 256
      %39 = vsyncadd [#allocation6], %s38
      %s40 = sshll.u32 [#allocation7], 4
      %s41 = int_to_ptr.vmem [resolvable:$true] %s40
      %46 = dma.hbm_to_vmem [thread:$0]  %s2, 256, %s41, [#allocation6], 128, 128, 8
    $region13: #{tpu_custom_call.1} parent=1 // pred_fallthru
      _
    // Predicated region
    $region14: #{tpu_custom_call.1} parent=1 // pred_check
      _
    $region15: #{tpu_custom_call.1} parent=1 // pred_check_branch
      %48 = sbr.rel (0) target = $region17
    $region16: #{tpu_custom_call.1} parent=1 // pred_region
      %49 = dma.done [#allocation3], 256
    $region17: #{tpu_custom_call.1} parent=1 // pred_fallthru
      _
    // Predicated region
    $region18: #{tpu_custom_call.1} parent=1 // pred_check
      _
    $region19: #{tpu_custom_call.1} parent=1 // pred_check_branch
      %51 = sbr.rel (0) target = $region21
    $region20: #{tpu_custom_call.1} parent=1 // pred_region
      %52 = dma.done [#allocation6], 256
    $region21: #{tpu_custom_call.1} parent=1 // pred_fallthru
      _
    // Predicated region
    $region22: #{tpu_custom_call.1} parent=1 // pred_check
      _
    $region23: #{tpu_custom_call.1} parent=1 // pred_check_branch
      %54 = sbr.rel (0) target = $region25
    $region24: #{tpu_custom_call.1} parent=1 // pred_region
      %55 = dma.done [#allocation6], 256
    $region25: #{tpu_custom_call.1} parent=1 // pred_fallthru
      _
    %v56 = vld [vmem:[#allocation2] sm:$0xff]
    %v57 = vld [vmem:[#allocation2 + $0x8] sm:$0xff]
    %v58 = vld [vmem:[#allocation5] sm:$0xff]
    %v59 = vld [vmem:[#allocation5 + $0x8] sm:$0xff]
    %v60 = vmul.f32 %v56, %v58
    %v61 = vmul.f32 %v57, %v59
    %v62 = vld [vmem:[#allocation7] sm:$0xff]
    %v63 = vld [vmem:[#allocation7 + $0x8] sm:$0xff]
    %v64 = vsub.f32 %v62, %v58
    %v65 = vsub.f32 %v63, %v59
    %v66 = vadd.f32 %v60, %v64
    %v67 = vadd.f32 %v61, %v65
    %68 = vst [vmem:[#allocation8] sm:$0xff] %v66
    %69 = vst [vmem:[#allocation8 + $0x8] sm:$0xff] %v67
    // Predicated region
    $region26: #{tpu_custom_call.1} parent=1 // pred_check
      _
    $region27: #{tpu_custom_call.1} parent=1 // pred_check_branch
      %71 = sbr.rel (0) target = $region29
    $region28: #{tpu_custom_call.1} parent=1 // pred_region
      %s73 = ssub.s32 256, 256
      %74 = vsyncadd [#allocation4], %s73
      %s75 = sshll.u32 [#allocation8], 4
      %s76 = int_to_ptr.vmem [resolvable:$true] %s75
      %81 = dma.vmem_to_hbm [thread:$0]  %s76, 256, %s3, [#allocation4], 128, 128, 8
    $region29: #{tpu_custom_call.1} parent=1 // pred_fallthru
      _
    // Predicated region
    $region30: #{tpu_custom_call.1} parent=1 // pred_check
      _
    $region31: #{tpu_custom_call.1} parent=1 // pred_check_branch
      %83 = sbr.rel (0) target = $region33
    $region32: #{tpu_custom_call.1} parent=1 // pred_region
      %84 = dma.done [#allocation4], 256
    $region33: #{tpu_custom_call.1} parent=1 // pred_fallthru
      _
    %85 = vsyncpa [#allocation3], 1
    %86 = vsyncpa [#allocation6], 1
    %87 = vsyncpa [#allocation4], 1

</llo_original>
